<compile_context>
chip_gen: v5e
topology: v5e:2x2
jax: 0.10.0
libtpu: 0.0.40
codegen_flags: <defaults>
</compile_context>

<pallas_src>
import jax
import jax.numpy as jnp
from jax.experimental import pallas as pl
from jax.experimental.pallas import tpu as pltpu


def _rnn_kernel(cat_ref, inp_ref, h0_ref, wc_ref, wi_ref, whh_ref, b_ref,
                wfc_ref, bfc_ref, out_ref, hout_ref):
    """Fused RNN forward for one chunk of BT sequences, L steps each.

    cat_ref: (L*BT, K)   category rows, time-major (row = t*BT + b)
    inp_ref: (L*BT, I)   input rows, time-major
    h0_ref:  (BT, H)     initial hidden state per sequence
    wc_ref:  (K, H)      category slice of W_ih, pre-transposed
    wi_ref:  (I, H)      input slice of W_ih, pre-transposed
    whh_ref: (H, H)      W_hh, pre-transposed
    b_ref:   (1, H)      b_ih + b_hh
    wfc_ref: (H, O)      fc weight, pre-transposed
    bfc_ref: (1, O)      fc bias
    out_ref: (L*BT, O)   log-softmax(fc(h_t)) rows, time-major
    hout_ref:(BT, H)     final hidden state per sequence
    """
    BT = h0_ref.shape[0]
    L = cat_ref.shape[0] // BT

    # Hoisted input projection + folded bias: two batched matmuls over all
    # L*BT rows, completely off the serial h -> h critical path.
    u = (jnp.dot(cat_ref[...], wc_ref[...], preferred_element_type=jnp.float32)
         + jnp.dot(inp_ref[...], wi_ref[...], preferred_element_type=jnp.float32)
         + b_ref[...])                                              # (L*BT, H)

    whh = whh_ref[...]
    h = h0_ref[...]                                                 # (BT, H)
    hs = []
    for t in range(L):                      # static unroll, L is small
        h = jnp.tanh(u[t * BT:(t + 1) * BT, :]
                     + jnp.dot(h, whh, preferred_element_type=jnp.float32))
        hs.append(h)
    hout_ref[...] = h

    # Batched fc + log-softmax over all steps; no VMEM scratch round-trip,
    # one dense (L*BT, O) store.
    hcat = jnp.concatenate(hs, axis=0)                              # (L*BT, H)
    logits = (jnp.dot(hcat, wfc_ref[...], preferred_element_type=jnp.float32)
              + bfc_ref[...])
    # TODO(synk): Dropout(p=0.1) is identity in eval mode; training-mode
    # stochastic dropout is not implemented here.
    m = jnp.max(logits, axis=-1, keepdims=True)
    z = logits - m
    lse = jnp.log(jnp.sum(jnp.exp(z), axis=-1, keepdims=True))
    out_ref[...] = z - lse                                          # (L*BT, O)


def preprocess_params(params, k_categories):
    """One-time parameter prep (hoisted out of the per-call hot path)."""
    w_ih, w_hh, b_ih, b_hh, w_fc, b_fc = params
    H = w_hh.shape[0]
    O = w_fc.shape[0]
    wc_t = jnp.asarray(w_ih[:, :k_categories].T, jnp.float32)   # (K, H)
    wi_t = jnp.asarray(w_ih[:, k_categories:].T, jnp.float32)   # (I, H)
    whh_t = jnp.asarray(w_hh.T, jnp.float32)                    # (H, H)
    b = (b_ih + b_hh).reshape(1, H).astype(jnp.float32)         # (1, H)
    wfc_t = jnp.asarray(w_fc.T, jnp.float32)                    # (H, O)
    bfc = b_fc.reshape(1, O).astype(jnp.float32)                # (1, O)
    return (wc_t, wi_t, whh_t, b, wfc_t, bfc)


def rnn_forward_batched(category, inp, hidden, pre_params, *, batch_tile=None):
    """Run B independent sequences through the fused RNN kernel.

    category: (B, L, K), inp: (B, L, I), hidden: (B, H)
    Returns (out (B, L, O) log-probs, h_out (B, H)).
    """
    wc_t, wi_t, whh_t, b, wfc_t, bfc = pre_params
    B, L, K = category.shape
    I = inp.shape[-1]
    H = hidden.shape[-1]
    O = wfc_t.shape[-1]

    BT = B if batch_tile is None else batch_tile
    assert B % BT == 0, "batch must be divisible by batch_tile"
    C = B // BT

    # Chunk the batch into C groups of BT sequences, time-major inside each
    # chunk so the kernel's hoisted projection rows [t*BT:(t+1)*BT] are step t.
    def to_chunks(x):                                   # (B, L, D) -> (C, L*BT, D)
        D = x.shape[-1]
        return (x.astype(jnp.float32)
                 .reshape(C, BT, L, D)
                 .transpose(0, 2, 1, 3)
                 .reshape(C, L * BT, D))

    cat_c = to_chunks(category)
    inp_c = to_chunks(inp)
    h0_c = hidden.astype(jnp.float32).reshape(C, BT, H)

    def const_spec(shape):
        return pl.BlockSpec(shape, lambda c: (0, 0))    # weight stays VMEM-resident

    out, h_out = pl.pallas_call(
        _rnn_kernel,
        grid=(C,),
        in_specs=[
            pl.BlockSpec((None, L * BT, K), lambda c: (c, 0, 0)),
            pl.BlockSpec((None, L * BT, I), lambda c: (c, 0, 0)),
            pl.BlockSpec((None, BT, H), lambda c: (c, 0, 0)),
            const_spec((K, H)),
            const_spec((I, H)),
            const_spec((H, H)),
            const_spec((1, H)),
            const_spec((H, O)),
            const_spec((1, O)),
        ],
        out_specs=(
            pl.BlockSpec((None, L * BT, O), lambda c: (c, 0, 0)),
            pl.BlockSpec((None, BT, H), lambda c: (c, 0, 0)),
        ),
        out_shape=(
            jax.ShapeDtypeStruct((C, L * BT, O), jnp.float32),
            jax.ShapeDtypeStruct((C, BT, H), jnp.float32),
        ),
        compiler_params=pltpu.CompilerParams(
            dimension_semantics=("parallel",)),   # splits chunks across v7x's 2 TCs
    )(cat_c, inp_c, h0_c, wc_t, wi_t, whh_t, b, wfc_t, bfc)

    out = out.reshape(C, L, BT, O).transpose(0, 2, 1, 3).reshape(B, L, O)
    h_out = h_out.reshape(B, H)
    return out, h_out


def rnn_forward(category, inp, hidden, pre_params):
    """Module-equivalent forward: category (L,K), input (L,I), hidden (1,H)."""
    out, h_out = rnn_forward_batched(category[None], inp[None], hidden, pre_params)
    return out[0], h_out


def _reference(category, inp, hidden, params):
    """Pure-JAX reference of the same forward pass (for correctness check)."""
    w_ih, w_hh, b_ih, b_hh, w_fc, b_fc = params
    x = jnp.concatenate([category, inp], axis=1)
    h = hidden
    outs = []
    for t in range(x.shape[0]):
        h = jnp.tanh(x[t:t + 1] @ w_ih.T + b_ih + h @ w_hh.T + b_hh)
        logits = h @ w_fc.T + b_fc
        outs.append(jax.nn.log_softmax(logits, axis=1))
    return jnp.concatenate(outs, axis=0), h


def init_params(key, input_size, hidden_size, output_size, k_categories):
    """Deterministic init mirroring PyTorch's U(-1/sqrt(H), 1/sqrt(H))."""
    ks = jax.random.split(key, 6)
    bound = 1.0 / jnp.sqrt(hidden_size)
    CI = k_categories + input_size
    u = lambda k, shape: jax.random.uniform(k, shape, jnp.float32, -bound, bound)
    w_ih = u(ks[0], (hidden_size, CI))
    w_hh = u(ks[1], (hidden_size, hidden_size))
    b_ih = u(ks[2], (hidden_size,))
    b_hh = u(ks[3], (hidden_size,))
    w_fc = u(ks[4], (output_size, hidden_size))
    b_fc = u(ks[5], (output_size,))
    return (w_ih, w_hh, b_ih, b_hh, w_fc, b_fc)


if __name__ == "__main__":
    input_size = 16
    hidden_size = 32
    output_size = 16
    k_categories = 4
    L = 8       # sequence length
    B = 16      # independent sequences for the batched path
    BT = 8      # sequences per grid step -> grid=(2,), "parallel" axis

    key = jax.random.PRNGKey(0)
    kp, kc, ki, kb = jax.random.split(key, 4)
    params = init_params(kp, input_size, hidden_size, output_size, k_categories)
    pre = preprocess_params(params, k_categories)

    # --- single-sequence, module-equivalent forward ---
    category = jax.random.normal(kc, (L, k_categories), jnp.float32)
    inp = jax.random.normal(ki, (L, input_size), jnp.float32)
    hidden = jnp.zeros((1, hidden_size), jnp.float32)  # initHidden()

    out, h_out = rnn_forward(category, inp, hidden, pre)
    jax.block_until_ready((out, h_out))

    ref_out, ref_h = _reference(category, inp, hidden, params)
    assert out.shape == (L, output_size) and h_out.shape == (1, hidden_size)
    assert jnp.allclose(out, ref_out, atol=1e-5, rtol=1e-5)
    assert jnp.allclose(h_out, ref_h, atol=1e-5, rtol=1e-5)

    # --- batched forward: B sequences through the MXU M dimension ---
    kcb, kib = jax.random.split(kb)
    category_b = jax.random.normal(kcb, (B, L, k_categories), jnp.float32)
    inp_b = jax.random.normal(kib, (B, L, input_size), jnp.float32)
    hidden_b = jnp.zeros((B, hidden_size), jnp.float32)

    out_b, h_b = rnn_forward_batched(category_b, inp_b, hidden_b, pre,
                                     batch_tile=BT)
    jax.block_until_ready((out_b, h_b))
    assert out_b.shape == (B, L, output_size) and h_b.shape == (B, hidden_size)
    for i in range(B):
        r_out, r_h = _reference(category_b[i], inp_b[i], hidden_b[i:i + 1], params)
        assert jnp.allclose(out_b[i], r_out, atol=1e-5, rtol=1e-5)
        assert jnp.allclose(h_b[i:i + 1], r_h, atol=1e-5, rtol=1e-5)

    print("KERNEL_OK")
</pallas_src>

<mosaic_0001>
module attributes {stable_mosaic.version = 11 : i64} {
  func.func @_rnn_kernel(%arg0: i32, %arg1: memref<1x8x4xf32, #tpu.memory_space<vmem>>, %arg2: memref<1x8x16xf32, #tpu.memory_space<vmem>>, %arg3: memref<1x1x32xf32, #tpu.memory_space<vmem>>, %arg4: memref<4x32xf32, #tpu.memory_space<vmem>>, %arg5: memref<16x32xf32, #tpu.memory_space<vmem>>, %arg6: memref<32x32xf32, #tpu.memory_space<vmem>>, %arg7: memref<1x32xf32, #tpu.memory_space<vmem>>, %arg8: memref<32x16xf32, #tpu.memory_space<vmem>>, %arg9: memref<1x16xf32, #tpu.memory_space<vmem>>, %arg10: memref<1x8x16xf32, #tpu.memory_space<vmem>>, %arg11: memref<1x1x32xf32, #tpu.memory_space<vmem>>) attributes {dimension_semantics = [#tpu.dimension_semantics<parallel>], iteration_bounds = array<i64: 1>, scalar_prefetch = 0 : i64, scratch_operands = 0 : i64, tpu.core_type = #tpu.core_type<tc>, window_params = [{transform_indices = @transform_0, window_bounds = array<i64: 1, 8, 4>}, {transform_indices = @transform_1, window_bounds = array<i64: 1, 8, 16>}, {transform_indices = @transform_2, window_bounds = array<i64: 1, 1, 32>}, {pipeline_mode = #tpu.pipeline_mode<synchronous>, transform_indices = @transform_3, window_bounds = array<i64: 4, 32>}, {pipeline_mode = #tpu.pipeline_mode<synchronous>, transform_indices = @transform_4, window_bounds = array<i64: 16, 32>}, {pipeline_mode = #tpu.pipeline_mode<synchronous>, transform_indices = @transform_5, window_bounds = array<i64: 32, 32>}, {pipeline_mode = #tpu.pipeline_mode<synchronous>, transform_indices = @transform_6, window_bounds = array<i64: 1, 32>}, {pipeline_mode = #tpu.pipeline_mode<synchronous>, transform_indices = @transform_7, window_bounds = array<i64: 32, 16>}, {pipeline_mode = #tpu.pipeline_mode<synchronous>, transform_indices = @transform_8, window_bounds = array<i64: 1, 16>}, {transform_indices = @transform_9, window_bounds = array<i64: 1, 8, 16>}, {transform_indices = @transform_10, window_bounds = array<i64: 1, 1, 32>}]} {
    %c0 = arith.constant 0 : index
    %c0_0 = arith.constant 0 : index
    %c0_1 = arith.constant 0 : index
    %0 = vector.load %arg1[%c0, %c0_0, %c0_1] : memref<1x8x4xf32, #tpu.memory_space<vmem>>, vector<1x8x4xf32>
    %1 = vector.shape_cast %0 : vector<1x8x4xf32> to vector<8x4xf32>
    %c0_2 = arith.constant 0 : index
    %c0_3 = arith.constant 0 : index
    %2 = vector.load %arg4[%c0_2, %c0_3] : memref<4x32xf32, #tpu.memory_space<vmem>>, vector<4x32xf32>
    %cst = arith.constant dense<0.000000e+00> : vector<8x32xf32>
    %3 = tpu.matmul %1, %2, %cst {dimension_numbers = #tpu.dot_dimension_numbers<[1], [0], [0], [1], [0, 0, 1, 1], [], []>} : vector<8x4xf32>, vector<4x32xf32>, vector<8x32xf32> -> vector<8x32xf32>
    %c0_4 = arith.constant 0 : index
    %c0_5 = arith.constant 0 : index
    %c0_6 = arith.constant 0 : index
    %4 = vector.load %arg2[%c0_4, %c0_5, %c0_6] : memref<1x8x16xf32, #tpu.memory_space<vmem>>, vector<1x8x16xf32>
    %5 = vector.shape_cast %4 : vector<1x8x16xf32> to vector<8x16xf32>
    %c0_7 = arith.constant 0 : index
    %c0_8 = arith.constant 0 : index
    %6 = vector.load %arg5[%c0_7, %c0_8] : memref<16x32xf32, #tpu.memory_space<vmem>>, vector<16x32xf32>
    %cst_9 = arith.constant dense<0.000000e+00> : vector<8x32xf32>
    %7 = tpu.matmul %5, %6, %cst_9 {dimension_numbers = #tpu.dot_dimension_numbers<[1], [0], [0], [1], [0, 0, 1, 1], [], []>} : vector<8x16xf32>, vector<16x32xf32>, vector<8x32xf32> -> vector<8x32xf32>
    %8 = arith.addf %3, %7 : vector<8x32xf32>
    %c0_10 = arith.constant 0 : index
    %c0_11 = arith.constant 0 : index
    %9 = vector.load %arg7[%c0_10, %c0_11] : memref<1x32xf32, #tpu.memory_space<vmem>>, vector<1x32xf32>
    %10 = vector.broadcast %9 : vector<1x32xf32> to vector<8x32xf32>
    %11 = arith.addf %8, %10 : vector<8x32xf32>
    %c0_12 = arith.constant 0 : index
    %c0_13 = arith.constant 0 : index
    %12 = vector.load %arg6[%c0_12, %c0_13] : memref<32x32xf32, #tpu.memory_space<vmem>>, vector<32x32xf32>
    %c0_14 = arith.constant 0 : index
    %c0_15 = arith.constant 0 : index
    %c0_16 = arith.constant 0 : index
    %13 = vector.load %arg3[%c0_14, %c0_15, %c0_16] : memref<1x1x32xf32, #tpu.memory_space<vmem>>, vector<1x1x32xf32>
    %14 = vector.shape_cast %13 : vector<1x1x32xf32> to vector<1x32xf32>
    %15 = vector.extract_strided_slice %11 {offsets = [0, 0], sizes = [1, 32], strides = [1, 1]} : vector<8x32xf32> to vector<1x32xf32>
    %cst_17 = arith.constant dense<0.000000e+00> : vector<1x32xf32>
    %16 = tpu.matmul %14, %12, %cst_17 {dimension_numbers = #tpu.dot_dimension_numbers<[1], [0], [0], [1], [0, 0, 1, 1], [], []>} : vector<1x32xf32>, vector<32x32xf32>, vector<1x32xf32> -> vector<1x32xf32>
    %17 = arith.addf %15, %16 : vector<1x32xf32>
    %18 = math.tanh %17 : vector<1x32xf32>
    %19 = vector.extract_strided_slice %11 {offsets = [1, 0], sizes = [1, 32], strides = [1, 1]} : vector<8x32xf32> to vector<1x32xf32>
    %cst_18 = arith.constant dense<0.000000e+00> : vector<1x32xf32>
    %20 = tpu.matmul %18, %12, %cst_18 {dimension_numbers = #tpu.dot_dimension_numbers<[1], [0], [0], [1], [0, 0, 1, 1], [], []>} : vector<1x32xf32>, vector<32x32xf32>, vector<1x32xf32> -> vector<1x32xf32>
    %21 = arith.addf %19, %20 : vector<1x32xf32>
    %22 = math.tanh %21 : vector<1x32xf32>
    %23 = vector.extract_strided_slice %11 {offsets = [2, 0], sizes = [1, 32], strides = [1, 1]} : vector<8x32xf32> to vector<1x32xf32>
    %cst_19 = arith.constant dense<0.000000e+00> : vector<1x32xf32>
    %24 = tpu.matmul %22, %12, %cst_19 {dimension_numbers = #tpu.dot_dimension_numbers<[1], [0], [0], [1], [0, 0, 1, 1], [], []>} : vector<1x32xf32>, vector<32x32xf32>, vector<1x32xf32> -> vector<1x32xf32>
    %25 = arith.addf %23, %24 : vector<1x32xf32>
    %26 = math.tanh %25 : vector<1x32xf32>
    %27 = vector.extract_strided_slice %11 {offsets = [3, 0], sizes = [1, 32], strides = [1, 1]} : vector<8x32xf32> to vector<1x32xf32>
    %cst_20 = arith.constant dense<0.000000e+00> : vector<1x32xf32>
    %28 = tpu.matmul %26, %12, %cst_20 {dimension_numbers = #tpu.dot_dimension_numbers<[1], [0], [0], [1], [0, 0, 1, 1], [], []>} : vector<1x32xf32>, vector<32x32xf32>, vector<1x32xf32> -> vector<1x32xf32>
    %29 = arith.addf %27, %28 : vector<1x32xf32>
    %30 = math.tanh %29 : vector<1x32xf32>
    %31 = vector.extract_strided_slice %11 {offsets = [4, 0], sizes = [1, 32], strides = [1, 1]} : vector<8x32xf32> to vector<1x32xf32>
    %cst_21 = arith.constant dense<0.000000e+00> : vector<1x32xf32>
    %32 = tpu.matmul %30, %12, %cst_21 {dimension_numbers = #tpu.dot_dimension_numbers<[1], [0], [0], [1], [0, 0, 1, 1], [], []>} : vector<1x32xf32>, vector<32x32xf32>, vector<1x32xf32> -> vector<1x32xf32>
    %33 = arith.addf %31, %32 : vector<1x32xf32>
    %34 = math.tanh %33 : vector<1x32xf32>
    %35 = vector.extract_strided_slice %11 {offsets = [5, 0], sizes = [1, 32], strides = [1, 1]} : vector<8x32xf32> to vector<1x32xf32>
    %cst_22 = arith.constant dense<0.000000e+00> : vector<1x32xf32>
    %36 = tpu.matmul %34, %12, %cst_22 {dimension_numbers = #tpu.dot_dimension_numbers<[1], [0], [0], [1], [0, 0, 1, 1], [], []>} : vector<1x32xf32>, vector<32x32xf32>, vector<1x32xf32> -> vector<1x32xf32>
    %37 = arith.addf %35, %36 : vector<1x32xf32>
    %38 = math.tanh %37 : vector<1x32xf32>
    %39 = vector.extract_strided_slice %11 {offsets = [6, 0], sizes = [1, 32], strides = [1, 1]} : vector<8x32xf32> to vector<1x32xf32>
    %cst_23 = arith.constant dense<0.000000e+00> : vector<1x32xf32>
    %40 = tpu.matmul %38, %12, %cst_23 {dimension_numbers = #tpu.dot_dimension_numbers<[1], [0], [0], [1], [0, 0, 1, 1], [], []>} : vector<1x32xf32>, vector<32x32xf32>, vector<1x32xf32> -> vector<1x32xf32>
    %41 = arith.addf %39, %40 : vector<1x32xf32>
    %42 = math.tanh %41 : vector<1x32xf32>
    %43 = vector.extract_strided_slice %11 {offsets = [7, 0], sizes = [1, 32], strides = [1, 1]} : vector<8x32xf32> to vector<1x32xf32>
    %cst_24 = arith.constant dense<0.000000e+00> : vector<1x32xf32>
    %44 = tpu.matmul %42, %12, %cst_24 {dimension_numbers = #tpu.dot_dimension_numbers<[1], [0], [0], [1], [0, 0, 1, 1], [], []>} : vector<1x32xf32>, vector<32x32xf32>, vector<1x32xf32> -> vector<1x32xf32>
    %45 = arith.addf %43, %44 : vector<1x32xf32>
    %46 = math.tanh %45 : vector<1x32xf32>
    %c0_25 = arith.constant 0 : index
    %c0_26 = arith.constant 0 : index
    %c0_27 = arith.constant 0 : index
    %47 = vector.load %arg11[%c0_25, %c0_26, %c0_27] : memref<1x1x32xf32, #tpu.memory_space<vmem>>, vector<1x1x32xf32>
    %48 = vector.shape_cast %47 : vector<1x1x32xf32> to vector<1x32xf32>
    %49 = vector.shape_cast %46 : vector<1x32xf32> to vector<1x1x32xf32>
    tpu.vector_store %arg11[%c0_25, %c0_26, %c0_27], %49 {strides = array<i32>} : memref<1x1x32xf32, #tpu.memory_space<vmem>>, vector<1x1x32xf32>,
    %50 = tpu.concatenate %18, %22, %26, %30, %34, %38, %42, %46 in 0 : vector<1x32xf32>, vector<1x32xf32>, vector<1x32xf32>, vector<1x32xf32>, vector<1x32xf32>, vector<1x32xf32>, vector<1x32xf32>, vector<1x32xf32> -> vector<8x32xf32>
    %c0_28 = arith.constant 0 : index
    %c0_29 = arith.constant 0 : index
    %51 = vector.load %arg8[%c0_28, %c0_29] : memref<32x16xf32, #tpu.memory_space<vmem>>, vector<32x16xf32>
    %cst_30 = arith.constant dense<0.000000e+00> : vector<8x16xf32>
    %52 = tpu.matmul %50, %51, %cst_30 {dimension_numbers = #tpu.dot_dimension_numbers<[1], [0], [0], [1], [0, 0, 1, 1], [], []>} : vector<8x32xf32>, vector<32x16xf32>, vector<8x16xf32> -> vector<8x16xf32>
    %c0_31 = arith.constant 0 : index
    %c0_32 = arith.constant 0 : index
    %53 = vector.load %arg9[%c0_31, %c0_32] : memref<1x16xf32, #tpu.memory_space<vmem>>, vector<1x16xf32>
    %54 = vector.broadcast %53 : vector<1x16xf32> to vector<8x16xf32>
    %55 = arith.addf %52, %54 : vector<8x16xf32>
    %cst_33 = arith.constant dense<0xFF800000> : vector<8xf32>
    %56 = vector.multi_reduction <maximumf>, %55, %cst_33 [1] : vector<8x16xf32> to vector<8xf32>
    %57 = vector.shape_cast %56 : vector<8xf32> to vector<8x1xf32>
    %58 = vector.broadcast %57 : vector<8x1xf32> to vector<8x16xf32>
    %59 = arith.subf %55, %58 : vector<8x16xf32>
    %60 = math.exp %59 : vector<8x16xf32>
    %cst_34 = arith.constant dense<0.000000e+00> : vector<8xf32>
    %61 = vector.multi_reduction <add>, %60, %cst_34 [1] : vector<8x16xf32> to vector<8xf32>
    %62 = vector.shape_cast %61 : vector<8xf32> to vector<8x1xf32>
    %63 = math.log %62 : vector<8x1xf32>
    %64 = vector.broadcast %63 : vector<8x1xf32> to vector<8x16xf32>
    %65 = arith.subf %59, %64 : vector<8x16xf32>
    %c0_35 = arith.constant 0 : index
    %c0_36 = arith.constant 0 : index
    %c0_37 = arith.constant 0 : index
    %66 = vector.load %arg10[%c0_35, %c0_36, %c0_37] : memref<1x8x16xf32, #tpu.memory_space<vmem>>, vector<1x8x16xf32>
    %67 = vector.shape_cast %66 : vector<1x8x16xf32> to vector<8x16xf32>
    %68 = vector.shape_cast %65 : vector<8x16xf32> to vector<1x8x16xf32>
    tpu.vector_store %arg10[%c0_35, %c0_36, %c0_37], %68 {strides = array<i32>} : memref<1x8x16xf32, #tpu.memory_space<vmem>>, vector<1x8x16xf32>,
    return
  }
  func.func @transform_0(%arg0: i32) -> (i32, i32, i32) {
    %c0_i32 = arith.constant 0 : i32
    %c0_i32_0 = arith.constant 0 : i32
    %c0_i32_1 = arith.constant 0 : i32
    return %arg0, %c0_i32, %c0_i32_0 : i32, i32, i32
  }
  func.func @transform_1(%arg0: i32) -> (i32, i32, i32) {
    %c0_i32 = arith.constant 0 : i32
    %c0_i32_0 = arith.constant 0 : i32
    %c0_i32_1 = arith.constant 0 : i32
    return %arg0, %c0_i32, %c0_i32_0 : i32, i32, i32
  }
  func.func @transform_2(%arg0: i32) -> (i32, i32, i32) {
    %c0_i32 = arith.constant 0 : i32
    %c0_i32_0 = arith.constant 0 : i32
    %c0_i32_1 = arith.constant 0 : i32
    return %arg0, %c0_i32, %c0_i32_0 : i32, i32, i32
  }
  func.func @transform_3(%arg0: i32) -> (i32, i32) {
    %c0_i32 = arith.constant 0 : i32
    %c0_i32_0 = arith.constant 0 : i32
    %c0_i32_1 = arith.constant 0 : i32
    return %c0_i32, %c0_i32_0 : i32, i32
  }
  func.func @transform_4(%arg0: i32) -> (i32, i32) {
    %c0_i32 = arith.constant 0 : i32
    %c0_i32_0 = arith.constant 0 : i32
    %c0_i32_1 = arith.constant 0 : i32
    return %c0_i32, %c0_i32_0 : i32, i32
  }
  func.func @transform_5(%arg0: i32) -> (i32, i32) {
    %c0_i32 = arith.constant 0 : i32
    %c0_i32_0 = arith.constant 0 : i32
    %c0_i32_1 = arith.constant 0 : i32
    return %c0_i32, %c0_i32_0 : i32, i32
  }
  func.func @transform_6(%arg0: i32) -> (i32, i32) {
    %c0_i32 = arith.constant 0 : i32
    %c0_i32_0 = arith.constant 0 : i32
    %c0_i32_1 = arith.constant 0 : i32
    return %c0_i32, %c0_i32_0 : i32, i32
  }
  func.func @transform_7(%arg0: i32) -> (i32, i32) {
    %c0_i32 = arith.constant 0 : i32
    %c0_i32_0 = arith.constant 0 : i32
    %c0_i32_1 = arith.constant 0 : i32
    return %c0_i32, %c0_i32_0 : i32, i32
  }
  func.func @transform_8(%arg0: i32) -> (i32, i32) {
    %c0_i32 = arith.constant 0 : i32
    %c0_i32_0 = arith.constant 0 : i32
    %c0_i32_1 = arith.constant 0 : i32
    return %c0_i32, %c0_i32_0 : i32, i32
  }
  func.func @transform_9(%arg0: i32) -> (i32, i32, i32) {
    %c0_i32 = arith.constant 0 : i32
    %c0_i32_0 = arith.constant 0 : i32
    %c0_i32_1 = arith.constant 0 : i32
    return %arg0, %c0_i32, %c0_i32_0 : i32, i32, i32
  }
  func.func @transform_10(%arg0: i32) -> (i32, i32, i32) {
    %c0_i32 = arith.constant 0 : i32
    %c0_i32_0 = arith.constant 0 : i32
    %c0_i32_1 = arith.constant 0 : i32
    return %arg0, %c0_i32, %c0_i32_0 : i32, i32, i32
  }
}

</mosaic_0001>

<llo_original>
// kernel: tpu_custom_call.1
$region0: #{tpu_custom_call.1}
  #allocation0 [shape = 'u32[]', space=smem, size = 0x4, offset = 0x4, fixed_abs, tag = 'smem constant byte address 0x4 - core index']
  #allocation1 [shape = 'u32[72,128]{1,0:T(1,128)}', space=vmem, size = 0x9000, scoped, tag = 'internal scratch']
  %s0 = inlined_call_operand.vmem [shape: f32[1,8,4], index: 0, kind: input, shape index: {}]
  %s1 = inlined_call_operand.hbm [shape: f32[1,8,16], index: 1, kind: input, shape index: {}]
  %s2 = inlined_call_operand.vmem [shape: f32[1,1,32], index: 2, kind: input, shape index: {}]
  %s3 = inlined_call_operand.hbm [shape: f32[4,32], index: 3, kind: input, shape index: {}]
  %s4 = inlined_call_operand.vmem [shape: f32[16,32], index: 4, kind: input, shape index: {}]
  %s5 = inlined_call_operand.vmem [shape: f32[32,32], index: 5, kind: input, shape index: {}]
  %s6 = inlined_call_operand.vmem [shape: f32[1,32], index: 6, kind: input, shape index: {}]
  %s7 = inlined_call_operand.vmem [shape: f32[32,16], index: 7, kind: input, shape index: {}]
  %s8 = inlined_call_operand.vmem [shape: f32[1,16], index: 8, kind: input, shape index: {}]
  %s9 = inlined_call_operand.hbm [shape: f32[1,8,16], index: 9, kind: output, shape index: {0}]
  %s10 = inlined_call_operand.hbm [shape: f32[1,1,32], index: 10, kind: output, shape index: {1}]
  %11 = xla_tuple %s9, %s10
  %s12 = sld [smem:[#allocation0]]
  $region62: #{tpu_custom_call.1} parent=0
    _
  %s14 = ssub.s32 1, %s12
  %s15 = scalar_select 0, %s14, %s12
  $region1: #{tpu_custom_call.1} parent=0
    #allocation2 [shape = 'u8[4096]{0}', space=vmem, size = 0x1000, scoped, tag = 'input window, operand 1, single buffered']
    #allocation3 [shape = 's32[1]{0}', space=sflag, size = 0x4, scoped, tag = 'scoped memory for tpu_custom_call.1']
    #allocation4 [shape = 's32[1]{0}', space=sflag, size = 0x4, scoped, tag = 'scoped memory for tpu_custom_call.1']
    #allocation5 [shape = 'u8[2048]{0}', space=vmem, size = 0x800, scoped, tag = 'input window, operand 3, single buffered']
    #allocation6 [shape = 's32[1]{0}', space=sflag, size = 0x4, scoped, tag = 'scoped memory for tpu_custom_call.1']
    #allocation7 [shape = 'u8[4096]{0}', space=vmem, size = 0x1000, scoped, tag = 'output window, operand 0, single buffered']
    #allocation8 [shape = 'u8[512]{0}', space=vmem, size = 0x400, scoped, tag = 'output window, operand 1, single buffered']
    #allocation9 [shape = 's32[1]{0}', space=sflag, size = 0x4, scoped, tag = 'scoped memory for tpu_custom_call.1']
    %16 = vsyncpa [#allocation3], 0
    %17 = vsyncpa [#allocation6], 0
    %18 = vsyncpa [#allocation4], 0
    %19 = vsyncpa [#allocation9], 0
    // Predicated region
    $region2: #{tpu_custom_call.1} parent=1 // pred_check
      _
    $region3: #{tpu_custom_call.1} parent=1 // pred_check_branch
      %21 = sbr.rel (0) target = $region5
    $region4: #{tpu_custom_call.1} parent=1 // pred_region
      _
    $region5: #{tpu_custom_call.1} parent=1 // pred_fallthru
      _
    // Predicated region
    $region6: #{tpu_custom_call.1} parent=1 // pred_check
      _
    $region7: #{tpu_custom_call.1} parent=1 // pred_check_branch
      %23 = sbr.rel (0) target = $region9
    $region8: #{tpu_custom_call.1} parent=1 // pred_region
      %25 = vsyncadd [#allocation3], 0
      %s27 = sshll.u32 %s1, 4
      %s28 = int_to_ptr.hbm [resolvable:$true] %s27
      %s29 = sshll.u32 [#allocation2], 4
      %s30 = int_to_ptr.vmem [resolvable:$true] %s29
      %32 = dma.hbm_to_vmem [thread:$0]  %s28, 128, %s30, [#allocation3]
    $region9: #{tpu_custom_call.1} parent=1 // pred_fallthru
      _
    // Predicated region
    $region10: #{tpu_custom_call.1} parent=1 // pred_check
      _
    $region11: #{tpu_custom_call.1} parent=1 // pred_check_branch
      %34 = sbr.rel (0) target = $region13
    $region12: #{tpu_custom_call.1} parent=1 // pred_region
      _
    $region13: #{tpu_custom_call.1} parent=1 // pred_fallthru
      _
    // Predicated region
    $region14: #{tpu_custom_call.1} parent=1 // pred_check
      _
    $region15: #{tpu_custom_call.1} parent=1 // pred_check_branch
      %36 = sbr.rel (0) target = $region17
    $region16: #{tpu_custom_call.1} parent=1 // pred_region
      %38 = vsyncadd [#allocation6], 0
      %s40 = sshll.u32 %s3, 4
      %s41 = int_to_ptr.hbm [resolvable:$true] %s40
      %s42 = sshll.u32 [#allocation5], 4
      %s43 = int_to_ptr.vmem [resolvable:$true] %s42
      %45 = dma.hbm_to_vmem [thread:$0]  %s41, 64, %s43, [#allocation6]
    $region17: #{tpu_custom_call.1} parent=1 // pred_fallthru
      _
    // Predicated region
    $region18: #{tpu_custom_call.1} parent=1 // pred_check
      _
    $region19: #{tpu_custom_call.1} parent=1 // pred_check_branch
      %47 = sbr.rel (0) target = $region21
    $region20: #{tpu_custom_call.1} parent=1 // pred_region
      _
    $region21: #{tpu_custom_call.1} parent=1 // pred_fallthru
      _
    // Predicated region
    $region22: #{tpu_custom_call.1} parent=1 // pred_check
      _
    $region23: #{tpu_custom_call.1} parent=1 // pred_check_branch
      %49 = sbr.rel (0) target = $region25
    $region24: #{tpu_custom_call.1} parent=1 // pred_region
      _
    $region25: #{tpu_custom_call.1} parent=1 // pred_fallthru
      _
    // Predicated region
    $region26: #{tpu_custom_call.1} parent=1 // pred_check
      _
    $region27: #{tpu_custom_call.1} parent=1 // pred_check_branch
      %51 = sbr.rel (0) target = $region29
    $region28: #{tpu_custom_call.1} parent=1 // pred_region
      _
    $region29: #{tpu_custom_call.1} parent=1 // pred_fallthru
      _
    // Predicated region
    $region30: #{tpu_custom_call.1} parent=1 // pred_check
      _
    $region31: #{tpu_custom_call.1} parent=1 // pred_check_branch
      %53 = sbr.rel (0) target = $region33
    $region32: #{tpu_custom_call.1} parent=1 // pred_region
      _
    $region33: #{tpu_custom_call.1} parent=1 // pred_fallthru
      _
    // Predicated region
    $region34: #{tpu_custom_call.1} parent=1 // pred_check
      _
    $region35: #{tpu_custom_call.1} parent=1 // pred_check_branch
      %55 = sbr.rel (0) target = $region37
    $region36: #{tpu_custom_call.1} parent=1 // pred_region
      _
    $region37: #{tpu_custom_call.1} parent=1 // pred_fallthru
      _
    // Predicated region
    $region38: #{tpu_custom_call.1} parent=1 // pred_check
      _
    $region39: #{tpu_custom_call.1} parent=1 // pred_check_branch
      %57 = sbr.rel (0) target = $region41
    $region40: #{tpu_custom_call.1} parent=1 // pred_region
      %59 = dma.done [#allocation3], 128
    $region41: #{tpu_custom_call.1} parent=1 // pred_fallthru
      _
    // Predicated region
    $region42: #{tpu_custom_call.1} parent=1 // pred_check
      _
    $region43: #{tpu_custom_call.1} parent=1 // pred_check_branch
      %61 = sbr.rel (0) target = $region45
    $region44: #{tpu_custom_call.1} parent=1 // pred_region
      %63 = dma.done [#allocation6], 64
    $region45: #{tpu_custom_call.1} parent=1 // pred_fallthru
      _
    %v64 = vld [vmem:[%s0] sm:$0xff]
    %v65 = vld [vmem:[#allocation5] sm:$0xf]
    %v66 = vld [vmem:[#allocation2] sm:$0xff]
    %v67 = vld [vmem:[%s4] sm:$0xff]
    %v68 = vld [vmem:[%s4 + $0x8] sm:$0xff]
    %vm69 = vcmask 130048
    %v71 = vsel %vm69, %v66, 0
    %73 = vmatpush.msra.mxu0 0.0
    %74 = vmatpush.msra.mxu0 0.0
    %75 = vmatpush.msra.mxu0 0.0
    %76 = vmatpush.msra.mxu0 0.0
    %77 = vmatpush.msra.mxu0 0.0
    %78 = vmatpush.msra.mxu0 0.0
    %79 = vmatpush.msra.mxu0 0.0
    %80 = vmatpush.msra.mxu0 0.0
    %81 = vmatpush.msra.mxu0 0.0
    %82 = vmatpush.msra.mxu0 0.0
    %83 = vmatpush.msra.mxu0 0.0
    %84 = vmatpush.msra.mxu0 0.0
    %85 = vmatpush.msra.mxu0 0.0
    %86 = vmatpush.msra.mxu0 0.0
    %87 = vmatpush.msra.mxu0 %v68
    %88 = vmatpush.msra.mxu0 %v67
    %89 = vmatmul.f32.gmra.mxu0 %v71
    %v90 = vpop.f32.mrf.mxu0
    %v91 = vadd.f32 0.0, %v90
    %92 = vdwg.mxu0
    %vm93 = vcmask 31744
    %v95 = vsel %vm93, %v64, 0
    %vm97 = vcmask 1043456
    %v99 = vsel %vm97, %v65, 0
    %101 = vmatpush.msra.mxu0 0.0
    %102 = vmatpush.msra.mxu0 0.0
    %103 = vmatpush.msra.mxu0 0.0
    %104 = vmatpush.msra.mxu0 0.0
    %105 = vmatpush.msra.mxu0 0.0
    %106 = vmatpush.msra.mxu0 0.0
    %107 = vmatpush.msra.mxu0 0.0
    %108 = vmatpush.msra.mxu0 0.0
    %109 = vmatpush.msra.mxu0 0.0
    %110 = vmatpush.msra.mxu0 0.0
    %111 = vmatpush.msra.mxu0 0.0
    %112 = vmatpush.msra.mxu0 0.0
    %113 = vmatpush.msra.mxu0 0.0
    %114 = vmatpush.msra.mxu0 0.0
    %115 = vmatpush.msra.mxu0 0.0
    %116 = vmatpush.msra.mxu0 %v99
    %117 = vmatmul.f32.gmra.mxu0 %v95
    %v118 = vpop.f32.mrf.mxu0
    %v119 = vadd.f32 %v91, %v118
    %120 = vdwg.mxu0
    %v121 = vld [vmem:[%s6] sm:$0x1]
    %v123 = vperm.slane %v121, 0
    %v125 = vadd.f32 %v119, %v123
    %v126 = vld [vmem:[%s5] sm:$0xff]
    %v127 = vld [vmem:[%s5 + $0x8] sm:$0xff]
    %v128 = vld [vmem:[%s5 + $0x10] sm:$0xff]
    %v129 = vld [vmem:[%s5 + $0x18] sm:$0xff]
    %v130 = vld [vmem:[%s2] sm:$0x1]
    %vm131 = vcmask 261120
    %v133 = vsel %vm131, %v130, 0
    %135 = vmatpush.msra.mxu0 0.0
    %136 = vmatpush.msra.mxu0 0.0
    %137 = vmatpush.msra.mxu0 0.0
    %138 = vmatpush.msra.mxu0 0.0
    %139 = vmatpush.msra.mxu0 0.0
    %140 = vmatpush.msra.mxu0 0.0
    %141 = vmatpush.msra.mxu0 0.0
    %142 = vmatpush.msra.mxu0 0.0
    %143 = vmatpush.msra.mxu0 0.0
    %144 = vmatpush.msra.mxu0 0.0
    %145 = vmatpush.msra.mxu0 0.0
    %146 = vmatpush.msra.mxu0 0.0
    %147 = vmatpush.msra.mxu0 %v129
    %148 = vmatpush.msra.mxu0 %v128
    %149 = vmatpush.msra.mxu0 %v127
    %150 = vmatpush.msra.mxu0 %v126
    %151 = vmatmul.f32.gmra.mxu0 %v133
    %v152 = vpop.f32.mrf.mxu0
    %v153 = vadd.f32 0.0, %v152
    %154 = vdwg.mxu0
    %v155 = vadd.f32 %v125, %v153
    %v156 = vtanh.pop %v155
    %v158 = vsel %vm131, %v156, 0
    %160 = vmatpush.msra.mxu0 0.0
    %161 = vmatpush.msra.mxu0 0.0
    %162 = vmatpush.msra.mxu0 0.0
    %163 = vmatpush.msra.mxu0 0.0
    %164 = vmatpush.msra.mxu0 0.0
    %165 = vmatpush.msra.mxu0 0.0
    %166 = vmatpush.msra.mxu0 0.0
    %167 = vmatpush.msra.mxu0 0.0
    %168 = vmatpush.msra.mxu0 0.0
    %169 = vmatpush.msra.mxu0 0.0
    %170 = vmatpush.msra.mxu0 0.0
    %171 = vmatpush.msra.mxu0 0.0
    %172 = vmatpush.msra.mxu0 %v129
    %173 = vmatpush.msra.mxu0 %v128
    %174 = vmatpush.msra.mxu0 %v127
    %175 = vmatpush.msra.mxu0 %v126
    %176 = vmatmul.f32.gmra.mxu0 %v158
    %v177 = vpop.f32.mrf.mxu0
    %v178 = vadd.f32 0.0, %v177
    %179 = vdwg.mxu0
    %v181 = vrot.slane %v178, 7
    %v183 = vadd.f32 %v125, %v181
    %v184 = vtanh.pop %v183
    %v186 = vrot.slane %v184, 1
    %v187 = vsel %vm131, %v186, 0
    %189 = vmatpush.msra.mxu0 0.0
    %190 = vmatpush.msra.mxu0 0.0
    %191 = vmatpush.msra.mxu0 0.0
    %192 = vmatpush.msra.mxu0 0.0
    %193 = vmatpush.msra.mxu0 0.0
    %194 = vmatpush.msra.mxu0 0.0
    %195 = vmatpush.msra.mxu0 0.0
    %196 = vmatpush.msra.mxu0 0.0
    %197 = vmatpush.msra.mxu0 0.0
    %198 = vmatpush.msra.mxu0 0.0
    %199 = vmatpush.msra.mxu0 0.0
    %200 = vmatpush.msra.mxu0 0.0
    %201 = vmatpush.msra.mxu0 %v129
    %202 = vmatpush.msra.mxu0 %v128
    %203 = vmatpush.msra.mxu0 %v127
    %204 = vmatpush.msra.mxu0 %v126
    %205 = vmatmul.f32.gmra.mxu0 %v187
    %v206 = vpop.f32.mrf.mxu0
    %v207 = vadd.f32 0.0, %v206
    %208 = vdwg.mxu0
    %v210 = vrot.slane %v207, 6
    %v212 = vadd.f32 %v125, %v210
    %v213 = vtanh.pop %v212
    %v215 = vrot.slane %v213, 2
    %v216 = vsel %vm131, %v215, 0
    %218 = vmatpush.msra.mxu0 0.0
    %219 = vmatpush.msra.mxu0 0.0
    %220 = vmatpush.msra.mxu0 0.0
    %221 = vmatpush.msra.mxu0 0.0
    %222 = vmatpush.msra.mxu0 0.0
    %223 = vmatpush.msra.mxu0 0.0
    %224 = vmatpush.msra.mxu0 0.0
    %225 = vmatpush.msra.mxu0 0.0
    %226 = vmatpush.msra.mxu0 0.0
    %227 = vmatpush.msra.mxu0 0.0
    %228 = vmatpush.msra.mxu0 0.0
    %229 = vmatpush.msra.mxu0 0.0
    %230 = vmatpush.msra.mxu0 %v129
    %231 = vmatpush.msra.mxu0 %v128
    %232 = vmatpush.msra.mxu0 %v127
    %233 = vmatpush.msra.mxu0 %v126
    %234 = vmatmul.f32.gmra.mxu0 %v216
    %v235 = vpop.f32.mrf.mxu0
    %v236 = vadd.f32 0.0, %v235
    %237 = vdwg.mxu0
    %v239 = vrot.slane %v236, 5
    %v241 = vadd.f32 %v125, %v239
    %v242 = vtanh.pop %v241
    %v244 = vrot.slane %v242, 3
    %v245 = vsel %vm131, %v244, 0
    %247 = vmatpush.msra.mxu0 0.0
    %248 = vmatpush.msra.mxu0 0.0
    %249 = vmatpush.msra.mxu0 0.0
    %250 = vmatpush.msra.mxu0 0.0
    %251 = vmatpush.msra.mxu0 0.0
    %252 = vmatpush.msra.mxu0 0.0
    %253 = vmatpush.msra.mxu0 0.0
    %254 = vmatpush.msra.mxu0 0.0
    %255 = vmatpush.msra.mxu0 0.0
    %256 = vmatpush.msra.mxu0 0.0
    %257 = vmatpush.msra.mxu0 0.0
    %258 = vmatpush.msra.mxu0 0.0
    %259 = vmatpush.msra.mxu0 %v129
    %260 = vmatpush.msra.mxu0 %v128
    %261 = vmatpush.msra.mxu0 %v127
    %262 = vmatpush.msra.mxu0 %v126
    %263 = vmatmul.f32.gmra.mxu0 %v245
    %v264 = vpop.f32.mrf.mxu0
    %v265 = vadd.f32 0.0, %v264
    %266 = vdwg.mxu0
    %v268 = vrot.slane %v265, 4
    %v270 = vadd.f32 %v125, %v268
    %v271 = vtanh.pop %v270
    %v273 = vrot.slane %v271, 4
    %v274 = vsel %vm131, %v273, 0
    %276 = vmatpush.msra.mxu0 0.0
    %277 = vmatpush.msra.mxu0 0.0
    %278 = vmatpush.msra.mxu0 0.0
    %279 = vmatpush.msra.mxu0 0.0
    %280 = vmatpush.msra.mxu0 0.0
    %281 = vmatpush.msra.mxu0 0.0
    %282 = vmatpush.msra.mxu0 0.0
    %283 = vmatpush.msra.mxu0 0.0
    %284 = vmatpush.msra.mxu0 0.0
    %285 = vmatpush.msra.mxu0 0.0
    %286 = vmatpush.msra.mxu0 0.0
    %287 = vmatpush.msra.mxu0 0.0
    %288 = vmatpush.msra.mxu0 %v129
    %289 = vmatpush.msra.mxu0 %v128
    %290 = vmatpush.msra.mxu0 %v127
    %291 = vmatpush.msra.mxu0 %v126
    %292 = vmatmul.f32.gmra.mxu0 %v274
    %v293 = vpop.f32.mrf.mxu0
    %v294 = vadd.f32 0.0, %v293
    %295 = vdwg.mxu0
    %v297 = vrot.slane %v294, 3
    %v299 = vadd.f32 %v125, %v297
    %v300 = vtanh.pop %v299
    %v302 = vrot.slane %v300, 5
    %v303 = vsel %vm131, %v302, 0
    %305 = vmatpush.msra.mxu0 0.0
    %306 = vmatpush.msra.mxu0 0.0
    %307 = vmatpush.msra.mxu0 0.0
    %308 = vmatpush.msra.mxu0 0.0
    %309 = vmatpush.msra.mxu0 0.0
    %310 = vmatpush.msra.mxu0 0.0
    %311 = vmatpush.msra.mxu0 0.0
    %312 = vmatpush.msra.mxu0 0.0
    %313 = vmatpush.msra.mxu0 0.0
    %314 = vmatpush.msra.mxu0 0.0
    %315 = vmatpush.msra.mxu0 0.0
    %316 = vmatpush.msra.mxu0 0.0
    %317 = vmatpush.msra.mxu0 %v129
    %318 = vmatpush.msra.mxu0 %v128
    %319 = vmatpush.msra.mxu0 %v127
    %320 = vmatpush.msra.mxu0 %v126
    %321 = vmatmul.f32.gmra.mxu0 %v303
    %v322 = vpop.f32.mrf.mxu0
    %v323 = vadd.f32 0.0, %v322
    %324 = vdwg.mxu0
    %v326 = vrot.slane %v323, 2
    %v328 = vadd.f32 %v125, %v326
    %v329 = vtanh.pop %v328
    %v331 = vrot.slane %v329, 6
    %v332 = vsel %vm131, %v331, 0
    %334 = vmatpush.msra.mxu0 0.0
    %335 = vmatpush.msra.mxu0 0.0
    %336 = vmatpush.msra.mxu0 0.0
    %337 = vmatpush.msra.mxu0 0.0
    %338 = vmatpush.msra.mxu0 0.0
    %339 = vmatpush.msra.mxu0 0.0
    %340 = vmatpush.msra.mxu0 0.0
    %341 = vmatpush.msra.mxu0 0.0
    %342 = vmatpush.msra.mxu0 0.0
    %343 = vmatpush.msra.mxu0 0.0
    %344 = vmatpush.msra.mxu0 0.0
    %345 = vmatpush.msra.mxu0 0.0
    %346 = vmatpush.msra.mxu0 %v129
    %347 = vmatpush.msra.mxu0 %v128
    %348 = vmatpush.msra.mxu0 %v127
    %349 = vmatpush.msra.mxu0 %v126
    %350 = vmatmul.f32.gmra.mxu0 %v332
    %v351 = vpop.f32.mrf.mxu0
    %v352 = vadd.f32 0.0, %v351
    %353 = vdwg.mxu0
    %v355 = vrot.slane %v352, 1
    %v357 = vadd.f32 %v125, %v355
    %v358 = vtanh.pop %v357
    %vm359 = vcmask 261127
    %360 = vst.msk [vmem:[#allocation8 - $0x7] sm:$0x80] %vm359, %v358
    %vm361 = vcmask 1040384
    %v362 = vsel %vm361, %v156, %v184
    %vm363 = vcmask 1041408
    %v364 = vsel %vm363, %v362, %v213
    %vm365 = vcmask 1042432
    %v366 = vsel %vm365, %v364, %v242
    %v367 = vsel %vm97, %v366, %v271
    %vm368 = vcmask 1044480
    %v369 = vsel %vm368, %v367, %v300
    %vm370 = vcmask 1045504
    %v371 = vsel %vm370, %v369, %v329
    %vm372 = vcmask 1046528
    %v373 = vsel %vm372, %v371, %v358
    %v374 = vld [vmem:[%s7] sm:$0xff]
    %v375 = vld [vmem:[%s7 + $0x8] sm:$0xff]
    %v376 = vld [vmem:[%s7 + $0x10] sm:$0xff]
    %v377 = vld [vmem:[%s7 + $0x18] sm:$0xff]
    %v378 = vld [vmem:[%s8] sm:$0x1]
    %v380 = vperm.slane %v378, 0
    %v383 = vsel %vm131, %v373, 0
    %385 = vmatpush.msra.mxu0 0.0
    %386 = vmatpush.msra.mxu0 0.0
    %387 = vmatpush.msra.mxu0 0.0
    %388 = vmatpush.msra.mxu0 0.0
    %389 = vmatpush.msra.mxu0 0.0
    %390 = vmatpush.msra.mxu0 0.0
    %391 = vmatpush.msra.mxu0 0.0
    %392 = vmatpush.msra.mxu0 0.0
    %393 = vmatpush.msra.mxu0 0.0
    %394 = vmatpush.msra.mxu0 0.0
    %395 = vmatpush.msra.mxu0 0.0
    %396 = vmatpush.msra.mxu0 0.0
    %397 = vmatpush.msra.mxu0 %v377
    %398 = vmatpush.msra.mxu0 %v376
    %399 = vmatpush.msra.mxu0 %v375
    %400 = vmatpush.msra.mxu0 %v374
    %401 = vmatmul.f32.gmra.mxu0 %v383
    %v402 = vpop.f32.mrf.mxu0
    %v403 = vadd.f32 %v380, %v402
    %404 = vdwg.mxu0
    %v405 = vsel %vm69, %v403, -inf
    %406 = vmax.xlane.f32.xlu0 %v405
    %v407 = vpop.xlane.xlu0 %406
    %v408 = vsub.f32 %v403, %v407
    %v409 = vmul.f32 %v408, 1.442695
    %v410 = vpow.pop %v409
    %v411 = vsel %vm69, %v410, 0.0
    %412 = vadd.xlane.f32.xlu0 %v411
    %v413 = vpop.xlane.xlu0 %412
    %v414 = vlog2.pop %v413
    %v415 = vmul.f32 %v414, 0.6931472
    %v416 = vsub.f32 %v408, %v415
    %417 = vst.msk [vmem:[#allocation7] sm:$0xff] %vm69, %v416
    // Predicated region
    $region46: #{tpu_custom_call.1} parent=1 // pred_check
      _
    $region47: #{tpu_custom_call.1} parent=1 // pred_check_branch
      %419 = sbr.rel (0) target = $region49
    $region48: #{tpu_custom_call.1} parent=1 // pred_region
      %421 = vsyncadd [#allocation4], 0
      %s423 = sshll.u32 [#allocation7], 4
      %s424 = int_to_ptr.vmem [resolvable:$true] %s423
      %s425 = sshll.u32 %s9, 4
      %s426 = int_to_ptr.hbm [resolvable:$true] %s425
      %428 = dma.vmem_to_hbm [thread:$0]  %s424, 128, %s426, [#allocation4]
    $region49: #{tpu_custom_call.1} parent=1 // pred_fallthru
      _
    // Predicated region
    $region50: #{tpu_custom_call.1} parent=1 // pred_check
      _
    $region51: #{tpu_custom_call.1} parent=1 // pred_check_branch
      %430 = sbr.rel (0) target = $region53
    $region52: #{tpu_custom_call.1} parent=1 // pred_region
      %432 = vsyncadd [#allocation9], 0
      %s434 = sshll.u32 [#allocation8], 4
      %s435 = int_to_ptr.vmem [resolvable:$true] %s434
      %s436 = sshll.u32 %s10, 4
      %s437 = int_to_ptr.hbm [resolvable:$true] %s436
      %439 = dma.vmem_to_hbm [thread:$0]  %s435, 16, %s437, [#allocation9]
    $region53: #{tpu_custom_call.1} parent=1 // pred_fallthru
      _
    // Predicated region
    $region54: #{tpu_custom_call.1} parent=1 // pred_check
      _
    $region55: #{tpu_custom_call.1} parent=1 // pred_check_branch
      %441 = sbr.rel (0) target = $region57
    $region56: #{tpu_custom_call.1} parent=1 // pred_region
      %443 = dma.done [#allocation4], 128
    $region57: #{tpu_custom_call.1} parent=1 // pred_fallthru
      _
    // Predicated region
    $region58: #{tpu_custom_call.1} parent=1 // pred_check
      _
    $region59: #{tpu_custom_call.1} parent=1 // pred_check_branch
      %445 = sbr.rel (0) target = $region61
    $region60: #{tpu_custom_call.1} parent=1 // pred_region
      %447 = dma.done [#allocation9], 16
    $region61: #{tpu_custom_call.1} parent=1 // pred_fallthru
      _
    %448 = vsyncpa [#allocation3], 1
    %449 = vsyncpa [#allocation6], 1
    %450 = vsyncpa [#allocation4], 1
    %451 = vsyncpa [#allocation9], 1

</llo_original>
